<compile_context>
chip_gen: v7x
topology: tpu7x:2x2x1
jax: 0.10.0
libtpu: 0.0.40
codegen_flags: <defaults>
</compile_context>

<pallas_src>
import jax
import jax.numpy as jnp
from jax import lax
from jax.experimental import pallas as pl
from jax.experimental.pallas import tpu as pltpu

HIDDEN = 20
LANES = 128
CHUNK_ROWS = 64          # (64,128) f32 chunk = 8 vregs; x/acc/tmp all register-resident
MAX_TILE_ROWS = 2048     # (2048,128) f32 = 1 MiB per I/O buffer


def mlp_kernel(x_ref, r_ref, e_ref, ac_ref, o_ref):
    """o = A*x + C + sum_k e_k * |x - r_k| on a lane-dense (tile_rows, 128) slab."""
    a = ac_ref[0]
    c = ac_ref[1]
    rows = x_ref.shape[0]

    def compute(x):
        acc = x * a + c                              # b2 & linear part folded into init
        for k in range(HIDDEN):                      # statically unrolled: sub, abs, mul, add
            acc = acc + e_ref[k] * jnp.abs(x - r_ref[k])
        return acc

    if rows > CHUNK_ROWS and rows % CHUNK_ROWS == 0:
        # Row-chunked inner loop, k-loop innermost: each (64,128) chunk of x and its
        # accumulator stay in vregs, avoiding VMEM ld/st round-trips per unrolled step.
        def body(ci, carry):
            i = pl.multiple_of(ci * CHUNK_ROWS, CHUNK_ROWS)
            o_ref[pl.ds(i, CHUNK_ROWS), :] = compute(x_ref[pl.ds(i, CHUNK_ROWS), :])
            return carry

        lax.fori_loop(0, rows // CHUNK_ROWS, body, 0)
    else:
        # Small / full-array block: compute directly.
        o_ref[...] = compute(x_ref[...])


def _choose_tile_rows(rows):
    if rows <= CHUNK_ROWS:
        return rows                                   # single full-array block
    # At least 2 blocks (pipelining + v7x 2-TC sharding), capped at MAX_TILE_ROWS,
    # rounded to a CHUNK_ROWS multiple so the in-kernel chunk loop covers the tile.
    n_blocks = max(2, pl.cdiv(rows, MAX_TILE_ROWS))
    tr = pl.cdiv(rows, n_blocks)
    tr = pl.cdiv(tr, CHUNK_ROWS) * CHUNK_ROWS
    return min(tr, MAX_TILE_ROWS)


def maximum_likelihood_forward(x, w1, b1, w2, b2):
    """x: (N,1) f32. w1: (1,20), b1: (20,), w2: (20,1), b2: (1,) with y = relu(x@w1+b1)@w2+b2."""
    N = x.shape[0]

    # ---- fold parameters into the abs form (O(20) work, done in the wrapper) ----
    w1f = jnp.asarray(w1, jnp.float32).reshape(-1)
    b1f = jnp.asarray(b1, jnp.float32).reshape(-1)
    w2f = jnp.asarray(w2, jnp.float32).reshape(-1)
    b2f = jnp.asarray(b2, jnp.float32).reshape(-1)
    dead = w1f == 0.0                                 # guard r_k = -b1_k / w1_k
    r = jnp.where(dead, 0.0, -b1f / jnp.where(dead, 1.0, w1f))
    e = jnp.where(dead, 0.0, 0.5 * jnp.abs(w1f) * w2f)
    a = 0.5 * jnp.sum(w2f * w1f)
    c = (b2f[0] + 0.5 * jnp.sum(w2f * b1f)
         + jnp.sum(jnp.where(dead, 0.5 * w2f * jnp.abs(b1f), 0.0)))
    ac = jnp.stack([a, c])                            # (2,) -> SMEM

    # ---- lane-dense (rows, 128) view of x; zero-copy when N % 128 == 0 ----
    xf = jnp.asarray(x, jnp.float32).reshape(-1)      # (N,) (no copy)
    rows = pl.cdiv(N, LANES)
    padded = rows * LANES
    if padded != N:
        # Only ragged N pays a pad/slice copy; row raggedness vs the tile size is
        # handled by partial blocks inside the pallas_call (no padding to tiles).
        xf = jnp.pad(xf, (0, padded - N))
    x2d = xf.reshape(rows, LANES)

    tile_rows = _choose_tile_rows(rows)
    grid = (pl.cdiv(rows, tile_rows),)

    smem = pl.BlockSpec(memory_space=pltpu.MemorySpace.SMEM)
    out2d = pl.pallas_call(
        mlp_kernel,
        out_shape=jax.ShapeDtypeStruct((rows, LANES), jnp.float32),
        grid_spec=pltpu.PrefetchScalarGridSpec(
            num_scalar_prefetch=0,
            grid=grid,
            in_specs=[
                pl.BlockSpec((tile_rows, LANES), lambda i: (i, 0)),  # x slab tile
                smem,                                                # r  (20,)
                smem,                                                # e  (20,)
                smem,                                                # [A, C]
            ],
            out_specs=pl.BlockSpec((tile_rows, LANES), lambda i: (i, 0)),
        ),
        compiler_params=pltpu.CompilerParams(
            dimension_semantics=("parallel",)),
    )(x2d, r, e, ac)

    if padded != N:
        return out2d.reshape(-1)[:N].reshape(N, 1)
    return out2d.reshape(N, 1)                        # reshape only, no copy


def _reference(x, w1, b1, w2, b2):
    return jnp.maximum(x @ w1 + b1[None, :], 0.0) @ w2 + b2[None, :]


if __name__ == "__main__":
    key = jax.random.PRNGKey(0)
    k1, k2, k3, k4, kx1, kx2, kx3 = jax.random.split(key, 7)

    # nn.Linear(1,20) / nn.Linear(20,1) parameters stored as (in, out): y = x @ W + b.
    w1 = jax.random.normal(k1, (1, HIDDEN), dtype=jnp.float32) * 0.5
    b1 = jax.random.normal(k2, (HIDDEN,), dtype=jnp.float32) * 0.1
    w2 = jax.random.normal(k3, (HIDDEN, 1), dtype=jnp.float32) * 0.5
    b2 = jax.random.normal(k4, (1,), dtype=jnp.float32) * 0.1

    # 1) tiny batch consistent with the module's (N, 1) input
    x = jax.random.normal(kx1, (8, 1), dtype=jnp.float32)
    y = jax.block_until_ready(maximum_likelihood_forward(x, w1, b1, w2, b2))
    assert y.shape == (8, 1)
    assert jnp.allclose(y, _reference(x, w1, b1, w2, b2), atol=3e-5, rtol=3e-5)

    # 2) ragged N (not a multiple of 128): exercises the pad / partial-row path
    x2 = jax.random.normal(kx2, (1000, 1), dtype=jnp.float32)
    y2 = jax.block_until_ready(maximum_likelihood_forward(x2, w1, b1, w2, b2))
    assert y2.shape == (1000, 1)
    assert jnp.allclose(y2, _reference(x2, w1, b1, w2, b2), atol=3e-5, rtol=3e-5)

    # 3) lane-aligned N: zero-copy wrapper, >= 2 grid steps, chunked inner loop
    x3 = jax.random.normal(kx3, (32768, 1), dtype=jnp.float32)
    y3 = jax.block_until_ready(maximum_likelihood_forward(x3, w1, b1, w2, b2))
    assert y3.shape == (32768, 1)
    assert jnp.allclose(y3, _reference(x3, w1, b1, w2, b2), atol=3e-5, rtol=3e-5)

    print("KERNEL_OK")
</pallas_src>

<mosaic_0001>
module attributes {stable_mosaic.version = 11 : i64} {
  func.func @mlp_kernel(%arg0: i32, %arg1: memref<1x128xf32, #tpu.memory_space<vmem>>, %arg2: memref<20xf32, #tpu.memory_space<smem>>, %arg3: memref<20xf32, #tpu.memory_space<smem>>, %arg4: memref<2xf32, #tpu.memory_space<smem>>, %arg5: memref<1x128xf32, #tpu.memory_space<vmem>>) attributes {dimension_semantics = [#tpu.dimension_semantics<parallel>], iteration_bounds = array<i64: 1>, scalar_prefetch = 0 : i64, scratch_operands = 0 : i64, tpu.core_type = #tpu.core_type<tc>, window_params = [{transform_indices = @transform_0, window_bounds = array<i64: 1, 128>}, {transform_indices = @transform_1, window_bounds = array<i64: 20>}, {transform_indices = @transform_2, window_bounds = array<i64: 20>}, {transform_indices = @transform_3, window_bounds = array<i64: 2>}, {transform_indices = @transform_4, window_bounds = array<i64: 1, 128>}]} {
    %c0 = arith.constant 0 : index
    %0 = memref.load %arg4[%c0] : memref<2xf32, #tpu.memory_space<smem>>
    %c1 = arith.constant 1 : index
    %1 = memref.load %arg4[%c1] : memref<2xf32, #tpu.memory_space<smem>>
    %c0_0 = arith.constant 0 : index
    %c0_1 = arith.constant 0 : index
    %2 = vector.load %arg1[%c0_0, %c0_1] : memref<1x128xf32, #tpu.memory_space<vmem>>, vector<1x128xf32>
    %3 = vector.broadcast %0 : f32 to vector<1x128xf32>
    %4 = arith.mulf %2, %3 : vector<1x128xf32>
    %5 = vector.broadcast %1 : f32 to vector<1x128xf32>
    %6 = arith.addf %4, %5 : vector<1x128xf32>
    %c0_2 = arith.constant 0 : index
    %7 = memref.load %arg3[%c0_2] : memref<20xf32, #tpu.memory_space<smem>>
    %c0_3 = arith.constant 0 : index
    %8 = memref.load %arg2[%c0_3] : memref<20xf32, #tpu.memory_space<smem>>
    %9 = vector.broadcast %8 : f32 to vector<1x128xf32>
    %10 = arith.subf %2, %9 : vector<1x128xf32>
    %11 = math.absf %10 : vector<1x128xf32>
    %12 = vector.broadcast %7 : f32 to vector<1x128xf32>
    %13 = arith.mulf %12, %11 : vector<1x128xf32>
    %14 = arith.addf %6, %13 : vector<1x128xf32>
    %c1_4 = arith.constant 1 : index
    %15 = memref.load %arg3[%c1_4] : memref<20xf32, #tpu.memory_space<smem>>
    %c1_5 = arith.constant 1 : index
    %16 = memref.load %arg2[%c1_5] : memref<20xf32, #tpu.memory_space<smem>>
    %17 = vector.broadcast %16 : f32 to vector<1x128xf32>
    %18 = arith.subf %2, %17 : vector<1x128xf32>
    %19 = math.absf %18 : vector<1x128xf32>
    %20 = vector.broadcast %15 : f32 to vector<1x128xf32>
    %21 = arith.mulf %20, %19 : vector<1x128xf32>
    %22 = arith.addf %14, %21 : vector<1x128xf32>
    %c2 = arith.constant 2 : index
    %23 = memref.load %arg3[%c2] : memref<20xf32, #tpu.memory_space<smem>>
    %c2_6 = arith.constant 2 : index
    %24 = memref.load %arg2[%c2_6] : memref<20xf32, #tpu.memory_space<smem>>
    %25 = vector.broadcast %24 : f32 to vector<1x128xf32>
    %26 = arith.subf %2, %25 : vector<1x128xf32>
    %27 = math.absf %26 : vector<1x128xf32>
    %28 = vector.broadcast %23 : f32 to vector<1x128xf32>
    %29 = arith.mulf %28, %27 : vector<1x128xf32>
    %30 = arith.addf %22, %29 : vector<1x128xf32>
    %c3 = arith.constant 3 : index
    %31 = memref.load %arg3[%c3] : memref<20xf32, #tpu.memory_space<smem>>
    %c3_7 = arith.constant 3 : index
    %32 = memref.load %arg2[%c3_7] : memref<20xf32, #tpu.memory_space<smem>>
    %33 = vector.broadcast %32 : f32 to vector<1x128xf32>
    %34 = arith.subf %2, %33 : vector<1x128xf32>
    %35 = math.absf %34 : vector<1x128xf32>
    %36 = vector.broadcast %31 : f32 to vector<1x128xf32>
    %37 = arith.mulf %36, %35 : vector<1x128xf32>
    %38 = arith.addf %30, %37 : vector<1x128xf32>
    %c4 = arith.constant 4 : index
    %39 = memref.load %arg3[%c4] : memref<20xf32, #tpu.memory_space<smem>>
    %c4_8 = arith.constant 4 : index
    %40 = memref.load %arg2[%c4_8] : memref<20xf32, #tpu.memory_space<smem>>
    %41 = vector.broadcast %40 : f32 to vector<1x128xf32>
    %42 = arith.subf %2, %41 : vector<1x128xf32>
    %43 = math.absf %42 : vector<1x128xf32>
    %44 = vector.broadcast %39 : f32 to vector<1x128xf32>
    %45 = arith.mulf %44, %43 : vector<1x128xf32>
    %46 = arith.addf %38, %45 : vector<1x128xf32>
    %c5 = arith.constant 5 : index
    %47 = memref.load %arg3[%c5] : memref<20xf32, #tpu.memory_space<smem>>
    %c5_9 = arith.constant 5 : index
    %48 = memref.load %arg2[%c5_9] : memref<20xf32, #tpu.memory_space<smem>>
    %49 = vector.broadcast %48 : f32 to vector<1x128xf32>
    %50 = arith.subf %2, %49 : vector<1x128xf32>
    %51 = math.absf %50 : vector<1x128xf32>
    %52 = vector.broadcast %47 : f32 to vector<1x128xf32>
    %53 = arith.mulf %52, %51 : vector<1x128xf32>
    %54 = arith.addf %46, %53 : vector<1x128xf32>
    %c6 = arith.constant 6 : index
    %55 = memref.load %arg3[%c6] : memref<20xf32, #tpu.memory_space<smem>>
    %c6_10 = arith.constant 6 : index
    %56 = memref.load %arg2[%c6_10] : memref<20xf32, #tpu.memory_space<smem>>
    %57 = vector.broadcast %56 : f32 to vector<1x128xf32>
    %58 = arith.subf %2, %57 : vector<1x128xf32>
    %59 = math.absf %58 : vector<1x128xf32>
    %60 = vector.broadcast %55 : f32 to vector<1x128xf32>
    %61 = arith.mulf %60, %59 : vector<1x128xf32>
    %62 = arith.addf %54, %61 : vector<1x128xf32>
    %c7 = arith.constant 7 : index
    %63 = memref.load %arg3[%c7] : memref<20xf32, #tpu.memory_space<smem>>
    %c7_11 = arith.constant 7 : index
    %64 = memref.load %arg2[%c7_11] : memref<20xf32, #tpu.memory_space<smem>>
    %65 = vector.broadcast %64 : f32 to vector<1x128xf32>
    %66 = arith.subf %2, %65 : vector<1x128xf32>
    %67 = math.absf %66 : vector<1x128xf32>
    %68 = vector.broadcast %63 : f32 to vector<1x128xf32>
    %69 = arith.mulf %68, %67 : vector<1x128xf32>
    %70 = arith.addf %62, %69 : vector<1x128xf32>
    %c8 = arith.constant 8 : index
    %71 = memref.load %arg3[%c8] : memref<20xf32, #tpu.memory_space<smem>>
    %c8_12 = arith.constant 8 : index
    %72 = memref.load %arg2[%c8_12] : memref<20xf32, #tpu.memory_space<smem>>
    %73 = vector.broadcast %72 : f32 to vector<1x128xf32>
    %74 = arith.subf %2, %73 : vector<1x128xf32>
    %75 = math.absf %74 : vector<1x128xf32>
    %76 = vector.broadcast %71 : f32 to vector<1x128xf32>
    %77 = arith.mulf %76, %75 : vector<1x128xf32>
    %78 = arith.addf %70, %77 : vector<1x128xf32>
    %c9 = arith.constant 9 : index
    %79 = memref.load %arg3[%c9] : memref<20xf32, #tpu.memory_space<smem>>
    %c9_13 = arith.constant 9 : index
    %80 = memref.load %arg2[%c9_13] : memref<20xf32, #tpu.memory_space<smem>>
    %81 = vector.broadcast %80 : f32 to vector<1x128xf32>
    %82 = arith.subf %2, %81 : vector<1x128xf32>
    %83 = math.absf %82 : vector<1x128xf32>
    %84 = vector.broadcast %79 : f32 to vector<1x128xf32>
    %85 = arith.mulf %84, %83 : vector<1x128xf32>
    %86 = arith.addf %78, %85 : vector<1x128xf32>
    %c10 = arith.constant 10 : index
    %87 = memref.load %arg3[%c10] : memref<20xf32, #tpu.memory_space<smem>>
    %c10_14 = arith.constant 10 : index
    %88 = memref.load %arg2[%c10_14] : memref<20xf32, #tpu.memory_space<smem>>
    %89 = vector.broadcast %88 : f32 to vector<1x128xf32>
    %90 = arith.subf %2, %89 : vector<1x128xf32>
    %91 = math.absf %90 : vector<1x128xf32>
    %92 = vector.broadcast %87 : f32 to vector<1x128xf32>
    %93 = arith.mulf %92, %91 : vector<1x128xf32>
    %94 = arith.addf %86, %93 : vector<1x128xf32>
    %c11 = arith.constant 11 : index
    %95 = memref.load %arg3[%c11] : memref<20xf32, #tpu.memory_space<smem>>
    %c11_15 = arith.constant 11 : index
    %96 = memref.load %arg2[%c11_15] : memref<20xf32, #tpu.memory_space<smem>>
    %97 = vector.broadcast %96 : f32 to vector<1x128xf32>
    %98 = arith.subf %2, %97 : vector<1x128xf32>
    %99 = math.absf %98 : vector<1x128xf32>
    %100 = vector.broadcast %95 : f32 to vector<1x128xf32>
    %101 = arith.mulf %100, %99 : vector<1x128xf32>
    %102 = arith.addf %94, %101 : vector<1x128xf32>
    %c12 = arith.constant 12 : index
    %103 = memref.load %arg3[%c12] : memref<20xf32, #tpu.memory_space<smem>>
    %c12_16 = arith.constant 12 : index
    %104 = memref.load %arg2[%c12_16] : memref<20xf32, #tpu.memory_space<smem>>
    %105 = vector.broadcast %104 : f32 to vector<1x128xf32>
    %106 = arith.subf %2, %105 : vector<1x128xf32>
    %107 = math.absf %106 : vector<1x128xf32>
    %108 = vector.broadcast %103 : f32 to vector<1x128xf32>
    %109 = arith.mulf %108, %107 : vector<1x128xf32>
    %110 = arith.addf %102, %109 : vector<1x128xf32>
    %c13 = arith.constant 13 : index
    %111 = memref.load %arg3[%c13] : memref<20xf32, #tpu.memory_space<smem>>
    %c13_17 = arith.constant 13 : index
    %112 = memref.load %arg2[%c13_17] : memref<20xf32, #tpu.memory_space<smem>>
    %113 = vector.broadcast %112 : f32 to vector<1x128xf32>
    %114 = arith.subf %2, %113 : vector<1x128xf32>
    %115 = math.absf %114 : vector<1x128xf32>
    %116 = vector.broadcast %111 : f32 to vector<1x128xf32>
    %117 = arith.mulf %116, %115 : vector<1x128xf32>
    %118 = arith.addf %110, %117 : vector<1x128xf32>
    %c14 = arith.constant 14 : index
    %119 = memref.load %arg3[%c14] : memref<20xf32, #tpu.memory_space<smem>>
    %c14_18 = arith.constant 14 : index
    %120 = memref.load %arg2[%c14_18] : memref<20xf32, #tpu.memory_space<smem>>
    %121 = vector.broadcast %120 : f32 to vector<1x128xf32>
    %122 = arith.subf %2, %121 : vector<1x128xf32>
    %123 = math.absf %122 : vector<1x128xf32>
    %124 = vector.broadcast %119 : f32 to vector<1x128xf32>
    %125 = arith.mulf %124, %123 : vector<1x128xf32>
    %126 = arith.addf %118, %125 : vector<1x128xf32>
    %c15 = arith.constant 15 : index
    %127 = memref.load %arg3[%c15] : memref<20xf32, #tpu.memory_space<smem>>
    %c15_19 = arith.constant 15 : index
    %128 = memref.load %arg2[%c15_19] : memref<20xf32, #tpu.memory_space<smem>>
    %129 = vector.broadcast %128 : f32 to vector<1x128xf32>
    %130 = arith.subf %2, %129 : vector<1x128xf32>
    %131 = math.absf %130 : vector<1x128xf32>
    %132 = vector.broadcast %127 : f32 to vector<1x128xf32>
    %133 = arith.mulf %132, %131 : vector<1x128xf32>
    %134 = arith.addf %126, %133 : vector<1x128xf32>
    %c16 = arith.constant 16 : index
    %135 = memref.load %arg3[%c16] : memref<20xf32, #tpu.memory_space<smem>>
    %c16_20 = arith.constant 16 : index
    %136 = memref.load %arg2[%c16_20] : memref<20xf32, #tpu.memory_space<smem>>
    %137 = vector.broadcast %136 : f32 to vector<1x128xf32>
    %138 = arith.subf %2, %137 : vector<1x128xf32>
    %139 = math.absf %138 : vector<1x128xf32>
    %140 = vector.broadcast %135 : f32 to vector<1x128xf32>
    %141 = arith.mulf %140, %139 : vector<1x128xf32>
    %142 = arith.addf %134, %141 : vector<1x128xf32>
    %c17 = arith.constant 17 : index
    %143 = memref.load %arg3[%c17] : memref<20xf32, #tpu.memory_space<smem>>
    %c17_21 = arith.constant 17 : index
    %144 = memref.load %arg2[%c17_21] : memref<20xf32, #tpu.memory_space<smem>>
    %145 = vector.broadcast %144 : f32 to vector<1x128xf32>
    %146 = arith.subf %2, %145 : vector<1x128xf32>
    %147 = math.absf %146 : vector<1x128xf32>
    %148 = vector.broadcast %143 : f32 to vector<1x128xf32>
    %149 = arith.mulf %148, %147 : vector<1x128xf32>
    %150 = arith.addf %142, %149 : vector<1x128xf32>
    %c18 = arith.constant 18 : index
    %151 = memref.load %arg3[%c18] : memref<20xf32, #tpu.memory_space<smem>>
    %c18_22 = arith.constant 18 : index
    %152 = memref.load %arg2[%c18_22] : memref<20xf32, #tpu.memory_space<smem>>
    %153 = vector.broadcast %152 : f32 to vector<1x128xf32>
    %154 = arith.subf %2, %153 : vector<1x128xf32>
    %155 = math.absf %154 : vector<1x128xf32>
    %156 = vector.broadcast %151 : f32 to vector<1x128xf32>
    %157 = arith.mulf %156, %155 : vector<1x128xf32>
    %158 = arith.addf %150, %157 : vector<1x128xf32>
    %c19 = arith.constant 19 : index
    %159 = memref.load %arg3[%c19] : memref<20xf32, #tpu.memory_space<smem>>
    %c19_23 = arith.constant 19 : index
    %160 = memref.load %arg2[%c19_23] : memref<20xf32, #tpu.memory_space<smem>>
    %161 = vector.broadcast %160 : f32 to vector<1x128xf32>
    %162 = arith.subf %2, %161 : vector<1x128xf32>
    %163 = math.absf %162 : vector<1x128xf32>
    %164 = vector.broadcast %159 : f32 to vector<1x128xf32>
    %165 = arith.mulf %164, %163 : vector<1x128xf32>
    %166 = arith.addf %158, %165 : vector<1x128xf32>
    %c0_24 = arith.constant 0 : index
    %c0_25 = arith.constant 0 : index
    %167 = vector.load %arg5[%c0_24, %c0_25] : memref<1x128xf32, #tpu.memory_space<vmem>>, vector<1x128xf32>
    tpu.vector_store %arg5[%c0_24, %c0_25], %166 {strides = array<i32>} : memref<1x128xf32, #tpu.memory_space<vmem>>, vector<1x128xf32>,
    return
  }
  func.func @transform_0(%arg0: i32) -> (i32, i32) {
    %c0_i32 = arith.constant 0 : i32
    %c0_i32_0 = arith.constant 0 : i32
    return %arg0, %c0_i32 : i32, i32
  }
  func.func @transform_1(%arg0: i32) -> i32 {
    %c0_i32 = arith.constant 0 : i32
    %c0_i32_0 = arith.constant 0 : i32
    return %c0_i32 : i32
  }
  func.func @transform_2(%arg0: i32) -> i32 {
    %c0_i32 = arith.constant 0 : i32
    %c0_i32_0 = arith.constant 0 : i32
    return %c0_i32 : i32
  }
  func.func @transform_3(%arg0: i32) -> i32 {
    %c0_i32 = arith.constant 0 : i32
    %c0_i32_0 = arith.constant 0 : i32
    return %c0_i32 : i32
  }
  func.func @transform_4(%arg0: i32) -> (i32, i32) {
    %c0_i32 = arith.constant 0 : i32
    %c0_i32_0 = arith.constant 0 : i32
    return %arg0, %c0_i32 : i32, i32
  }
}

</mosaic_0001>

<llo_original>
// kernel: tpu_custom_call.1
$region0: #{tpu_custom_call.1}
  #allocation0 [shape = 'u32[]', space=smem, size = 0x4, offset = 0x4, fixed_abs, tag = 'smem constant byte address 0x4 - core index']
  #allocation1 [shape = 'u32[144,128]{1,0:T(1,128)}', space=vmem, size = 0x12000, scoped, tag = 'internal scratch']
  %s0 = inlined_call_operand.hbm [shape: f32[1,128], index: 0, kind: input, shape index: {}]
  %s1 = inlined_call_operand.vmem [shape: f32[20], index: 1, kind: input, shape index: {}]
  %s2 = inlined_call_operand.vmem [shape: f32[20], index: 2, kind: input, shape index: {}]
  %s3 = inlined_call_operand.vmem [shape: f32[2], index: 3, kind: input, shape index: {}]
  %s4 = inlined_call_operand.hbm [shape: f32[1,128], index: 4, kind: output, shape index: {}]
  %s5 = sld [smem:[#allocation0]]
  $region42: #{tpu_custom_call.1} parent=0
    _
  %s7 = ssub.s32 1, %s5
  %s8 = scalar_select 0, %s7, %s5
  $region1: #{tpu_custom_call.1} parent=0
    #allocation2 [shape = 'u8[512]{0}', space=vmem, size = 0x400, scoped, tag = 'input window, operand 0, single buffered']
    #allocation3 [shape = 's32[1]{0}', space=sflag, size = 0x4, scoped, tag = 'scoped memory for tpu_custom_call.1']
    #allocation4 [shape = 's32[1]{0}', space=sflag, size = 0x4, scoped, tag = 'scoped memory for tpu_custom_call.1']
    #allocation5 [shape = 's32[1]{0}', space=sflag, size = 0x4, scoped, tag = 'scoped memory for tpu_custom_call.1']
    #allocation6 [shape = 'u8[512]{0}', space=smem, size = 0x200, scoped, tag = 'input window, operand 1, single buffered']
    #allocation7 [shape = 'u8[512]{0}', space=smem, size = 0x200, scoped, tag = 'input window, operand 2, single buffered']
    #allocation8 [shape = 's32[1]{0}', space=sflag, size = 0x4, scoped, tag = 'scoped memory for tpu_custom_call.1']
    #allocation9 [shape = 'u8[512]{0}', space=smem, size = 0x200, scoped, tag = 'input window, operand 3, single buffered']
    #allocation10 [shape = 'u8[512]{0}', space=vmem, size = 0x400, scoped, tag = 'output window, operand 0, single buffered']
    %9 = vsyncpa [#allocation3], 0
    %10 = vsyncpa [#allocation5], 0
    %11 = vsyncpa [#allocation8], 0
    %12 = vsyncpa [#allocation4], 0
    // Predicated region
    $region2: #{tpu_custom_call.1} parent=1 // pred_check
      _
    $region3: #{tpu_custom_call.1} parent=1 // pred_check_branch
      %14 = sbr.rel (0) target = $region5
    $region4: #{tpu_custom_call.1} parent=1 // pred_region
      %s16 = ssub.s32 16, 16
      %17 = vsyncadd [#allocation3], %s16
      %s19 = sshll.u32 [#allocation2], 4
      %s20 = int_to_ptr.vmem [resolvable:$true] %s19
      %22 = dma.hbm_to_vmem [thread:$0]  %s0, 16, %s20, [#allocation3]
    $region5: #{tpu_custom_call.1} parent=1 // pred_fallthru
      _
    // Predicated region
    $region6: #{tpu_custom_call.1} parent=1 // pred_check
      _
    $region7: #{tpu_custom_call.1} parent=1 // pred_check_branch
      %24 = sbr.rel (0) target = $region9
    $region8: #{tpu_custom_call.1} parent=1 // pred_region
      %s26 = ssub.s32 16, 16
      %27 = vsyncadd [#allocation5], %s26
      %s29 = sshll.u32 %s1, 4
      %s30 = int_to_ptr.vmem [resolvable:$true] %s29
      %32 = dma.vmem_to_smem %s30, 16, [#allocation6], [#allocation5]
    $region9: #{tpu_custom_call.1} parent=1 // pred_fallthru
      _
    // Predicated region
    $region10: #{tpu_custom_call.1} parent=1 // pred_check
      _
    $region11: #{tpu_custom_call.1} parent=1 // pred_check_branch
      %34 = sbr.rel (0) target = $region13
    $region12: #{tpu_custom_call.1} parent=1 // pred_region
      %s36 = ssub.s32 16, 16
      %37 = vsyncadd [#allocation8], %s36
      %s39 = sshll.u32 %s2, 4
      %s40 = int_to_ptr.vmem [resolvable:$true] %s39
      %42 = dma.vmem_to_smem %s40, 16, [#allocation7], [#allocation8]
    $region13: #{tpu_custom_call.1} parent=1 // pred_fallthru
      _
    // Predicated region
    $region14: #{tpu_custom_call.1} parent=1 // pred_check
      _
    $region15: #{tpu_custom_call.1} parent=1 // pred_check_branch
      %44 = sbr.rel (0) target = $region17
    $region16: #{tpu_custom_call.1} parent=1 // pred_region
      %s46 = ssub.s32 16, 16
      %47 = vsyncadd [#allocation8], %s46
      %s49 = sshll.u32 %s3, 4
      %s50 = int_to_ptr.vmem [resolvable:$true] %s49
      %52 = dma.vmem_to_smem %s50, 16, [#allocation9], [#allocation8]
    $region17: #{tpu_custom_call.1} parent=1 // pred_fallthru
      _
    // Predicated region
    $region18: #{tpu_custom_call.1} parent=1 // pred_check
      _
    $region19: #{tpu_custom_call.1} parent=1 // pred_check_branch
      %54 = sbr.rel (0) target = $region21
    $region20: #{tpu_custom_call.1} parent=1 // pred_region
      %55 = dma.done [#allocation3], 16
    $region21: #{tpu_custom_call.1} parent=1 // pred_fallthru
      _
    // Predicated region
    $region22: #{tpu_custom_call.1} parent=1 // pred_check
      _
    $region23: #{tpu_custom_call.1} parent=1 // pred_check_branch
      %57 = sbr.rel (0) target = $region25
    $region24: #{tpu_custom_call.1} parent=1 // pred_region
      %58 = dma.done [#allocation5], 16
    $region25: #{tpu_custom_call.1} parent=1 // pred_fallthru
      _
    // Predicated region
    $region26: #{tpu_custom_call.1} parent=1 // pred_check
      _
    $region27: #{tpu_custom_call.1} parent=1 // pred_check_branch
      %60 = sbr.rel (0) target = $region29
    $region28: #{tpu_custom_call.1} parent=1 // pred_region
      %61 = dma.done [#allocation8], 16
    $region29: #{tpu_custom_call.1} parent=1 // pred_fallthru
      _
    // Predicated region
    $region30: #{tpu_custom_call.1} parent=1 // pred_check
      _
    $region31: #{tpu_custom_call.1} parent=1 // pred_check_branch
      %63 = sbr.rel (0) target = $region33
    $region32: #{tpu_custom_call.1} parent=1 // pred_region
      %64 = dma.done [#allocation8], 16
    $region33: #{tpu_custom_call.1} parent=1 // pred_fallthru
      _
    %65 = sfence
    %s66 = sld [smem:[#allocation9]]
    %s67 = sld [smem:[#allocation9 + $0x1]]
    %v68 = vld [vmem:[#allocation2] sm:$0x1]
    %v69 = vstv %s66
    %v70 = vmul.f32 %v68, %v69
    %v71 = vstv %s67
    %v72 = vadd.f32 %v70, %v71
    %s73 = sld [smem:[#allocation7]]
    %s74 = sld [smem:[#allocation6]]
    %v75 = vstv %s74
    %v76 = vsub.f32 %v68, %v75
    %v77 = vand.u32 2147483647, %v76
    %v78 = vstv %s73
    %v79 = vmul.f32 %v78, %v77
    %v80 = vadd.f32 %v72, %v79
    %s81 = sld [smem:[#allocation7 + $0x1]]
    %s82 = sld [smem:[#allocation6 + $0x1]]
    %v83 = vstv %s82
    %v84 = vsub.f32 %v68, %v83
    %v85 = vand.u32 2147483647, %v84
    %v86 = vstv %s81
    %v87 = vmul.f32 %v86, %v85
    %v88 = vadd.f32 %v80, %v87
    %s89 = sld [smem:[#allocation7 + $0x2]]
    %s90 = sld [smem:[#allocation6 + $0x2]]
    %v91 = vstv %s90
    %v92 = vsub.f32 %v68, %v91
    %v93 = vand.u32 2147483647, %v92
    %v94 = vstv %s89
    %v95 = vmul.f32 %v94, %v93
    %v96 = vadd.f32 %v88, %v95
    %s97 = sld [smem:[#allocation7 + $0x3]]
    %s98 = sld [smem:[#allocation6 + $0x3]]
    %v99 = vstv %s98
    %v100 = vsub.f32 %v68, %v99
    %v101 = vand.u32 2147483647, %v100
    %v102 = vstv %s97
    %v103 = vmul.f32 %v102, %v101
    %v104 = vadd.f32 %v96, %v103
    %s105 = sld [smem:[#allocation7 + $0x4]]
    %s106 = sld [smem:[#allocation6 + $0x4]]
    %v107 = vstv %s106
    %v108 = vsub.f32 %v68, %v107
    %v109 = vand.u32 2147483647, %v108
    %v110 = vstv %s105
    %v111 = vmul.f32 %v110, %v109
    %v112 = vadd.f32 %v104, %v111
    %s113 = sld [smem:[#allocation7 + $0x5]]
    %s114 = sld [smem:[#allocation6 + $0x5]]
    %v115 = vstv %s114
    %v116 = vsub.f32 %v68, %v115
    %v117 = vand.u32 2147483647, %v116
    %v118 = vstv %s113
    %v119 = vmul.f32 %v118, %v117
    %v120 = vadd.f32 %v112, %v119
    %s121 = sld [smem:[#allocation7 + $0x6]]
    %s122 = sld [smem:[#allocation6 + $0x6]]
    %v123 = vstv %s122
    %v124 = vsub.f32 %v68, %v123
    %v125 = vand.u32 2147483647, %v124
    %v126 = vstv %s121
    %v127 = vmul.f32 %v126, %v125
    %v128 = vadd.f32 %v120, %v127
    %s129 = sld [smem:[#allocation7 + $0x7]]
    %s130 = sld [smem:[#allocation6 + $0x7]]
    %v131 = vstv %s130
    %v132 = vsub.f32 %v68, %v131
    %v133 = vand.u32 2147483647, %v132
    %v134 = vstv %s129
    %v135 = vmul.f32 %v134, %v133
    %v136 = vadd.f32 %v128, %v135
    %s137 = sld [smem:[#allocation7 + $0x8]]
    %s138 = sld [smem:[#allocation6 + $0x8]]
    %v139 = vstv %s138
    %v140 = vsub.f32 %v68, %v139
    %v141 = vand.u32 2147483647, %v140
    %v142 = vstv %s137
    %v143 = vmul.f32 %v142, %v141
    %v144 = vadd.f32 %v136, %v143
    %s145 = sld [smem:[#allocation7 + $0x9]]
    %s146 = sld [smem:[#allocation6 + $0x9]]
    %v147 = vstv %s146
    %v148 = vsub.f32 %v68, %v147
    %v149 = vand.u32 2147483647, %v148
    %v150 = vstv %s145
    %v151 = vmul.f32 %v150, %v149
    %v152 = vadd.f32 %v144, %v151
    %s153 = sld [smem:[#allocation7 + $0xa]]
    %s154 = sld [smem:[#allocation6 + $0xa]]
    %v155 = vstv %s154
    %v156 = vsub.f32 %v68, %v155
    %v157 = vand.u32 2147483647, %v156
    %v158 = vstv %s153
    %v159 = vmul.f32 %v158, %v157
    %v160 = vadd.f32 %v152, %v159
    %s161 = sld [smem:[#allocation7 + $0xb]]
    %s162 = sld [smem:[#allocation6 + $0xb]]
    %v163 = vstv %s162
    %v164 = vsub.f32 %v68, %v163
    %v165 = vand.u32 2147483647, %v164
    %v166 = vstv %s161
    %v167 = vmul.f32 %v166, %v165
    %v168 = vadd.f32 %v160, %v167
    %s169 = sld [smem:[#allocation7 + $0xc]]
    %s170 = sld [smem:[#allocation6 + $0xc]]
    %v171 = vstv %s170
    %v172 = vsub.f32 %v68, %v171
    %v173 = vand.u32 2147483647, %v172
    %v174 = vstv %s169
    %v175 = vmul.f32 %v174, %v173
    %v176 = vadd.f32 %v168, %v175
    %s177 = sld [smem:[#allocation7 + $0xd]]
    %s178 = sld [smem:[#allocation6 + $0xd]]
    %v179 = vstv %s178
    %v180 = vsub.f32 %v68, %v179
    %v181 = vand.u32 2147483647, %v180
    %v182 = vstv %s177
    %v183 = vmul.f32 %v182, %v181
    %v184 = vadd.f32 %v176, %v183
    %s185 = sld [smem:[#allocation7 + $0xe]]
    %s186 = sld [smem:[#allocation6 + $0xe]]
    %v187 = vstv %s186
    %v188 = vsub.f32 %v68, %v187
    %v189 = vand.u32 2147483647, %v188
    %v190 = vstv %s185
    %v191 = vmul.f32 %v190, %v189
    %v192 = vadd.f32 %v184, %v191
    %s193 = sld [smem:[#allocation7 + $0xf]]
    %s194 = sld [smem:[#allocation6 + $0xf]]
    %v195 = vstv %s194
    %v196 = vsub.f32 %v68, %v195
    %v197 = vand.u32 2147483647, %v196
    %v198 = vstv %s193
    %v199 = vmul.f32 %v198, %v197
    %v200 = vadd.f32 %v192, %v199
    %s201 = sld [smem:[#allocation7 + $0x10]]
    %s202 = sld [smem:[#allocation6 + $0x10]]
    %v203 = vstv %s202
    %v204 = vsub.f32 %v68, %v203
    %v205 = vand.u32 2147483647, %v204
    %v206 = vstv %s201
    %v207 = vmul.f32 %v206, %v205
    %v208 = vadd.f32 %v200, %v207
    %s209 = sld [smem:[#allocation7 + $0x11]]
    %s210 = sld [smem:[#allocation6 + $0x11]]
    %v211 = vstv %s210
    %v212 = vsub.f32 %v68, %v211
    %v213 = vand.u32 2147483647, %v212
    %v214 = vstv %s209
    %v215 = vmul.f32 %v214, %v213
    %v216 = vadd.f32 %v208, %v215
    %s217 = sld [smem:[#allocation7 + $0x12]]
    %s218 = sld [smem:[#allocation6 + $0x12]]
    %v219 = vstv %s218
    %v220 = vsub.f32 %v68, %v219
    %v221 = vand.u32 2147483647, %v220
    %v222 = vstv %s217
    %v223 = vmul.f32 %v222, %v221
    %v224 = vadd.f32 %v216, %v223
    %s225 = sld [smem:[#allocation7 + $0x13]]
    %s226 = sld [smem:[#allocation6 + $0x13]]
    %v227 = vstv %s226
    %v228 = vsub.f32 %v68, %v227
    %v229 = vand.u32 2147483647, %v228
    %v230 = vstv %s225
    %v231 = vmul.f32 %v230, %v229
    %v232 = vadd.f32 %v224, %v231
    %233 = vst [vmem:[#allocation10] sm:$0x1] %v232
    // Predicated region
    $region34: #{tpu_custom_call.1} parent=1 // pred_check
      _
    $region35: #{tpu_custom_call.1} parent=1 // pred_check_branch
      %235 = sbr.rel (0) target = $region37
    $region36: #{tpu_custom_call.1} parent=1 // pred_region
      %s237 = ssub.s32 16, 16
      %238 = vsyncadd [#allocation4], %s237
      %s240 = sshll.u32 [#allocation10], 4
      %s241 = int_to_ptr.vmem [resolvable:$true] %s240
      %243 = dma.vmem_to_hbm [thread:$0]  %s241, 16, %s4, [#allocation4]
    $region37: #{tpu_custom_call.1} parent=1 // pred_fallthru
      _
    // Predicated region
    $region38: #{tpu_custom_call.1} parent=1 // pred_check
      _
    $region39: #{tpu_custom_call.1} parent=1 // pred_check_branch
      %245 = sbr.rel (0) target = $region41
    $region40: #{tpu_custom_call.1} parent=1 // pred_region
      %246 = dma.done [#allocation4], 16
    $region41: #{tpu_custom_call.1} parent=1 // pred_fallthru
      _
    %247 = vsyncpa [#allocation3], 1
    %248 = vsyncpa [#allocation4], 1
    %249 = vsyncpa [#allocation5], 1
    %250 = vsyncpa [#allocation8], 1

</llo_original>
